<compile_context>
chip_gen: v5e
topology: v5e:2x2
jax: 0.10.0
libtpu: 0.0.40
codegen_flags: <defaults>
</compile_context>

<pallas_src>
import jax
import jax.numpy as jnp
import numpy as np
from jax import lax
from jax.experimental import pallas as pl
from jax.experimental.pallas import tpu as pltpu

_LANE = 128
_SUBLANE = 8
_VMEM_WORKING_SET_BYTES = 24 * 1024 * 1024   # double-buffered tile budget (v7x-safe)
_VMEM_LIMIT_BYTES = 48 * 1024 * 1024         # scoped VMEM ceiling (v7x physical: 64 MiB)
_MIN_GRID_STEPS = 8                          # keep both v7x TCs + the pipeline fed


def _round_up(x: int, m: int) -> int:
    return -(-x // m) * m


def _outconv_kernel(x_ref, w_ref, b_ref, o_ref):
    # x_ref: (1, Cin, T)  w_ref: (Cout, Cin)  b_ref: (Cout, 1) f32  o_ref: (1, Cout, T)
    # Native-dtype operands on the MXU; f32 accumulation via preferred_element_type.
    y = jnp.dot(w_ref[...], x_ref[0], preferred_element_type=jnp.float32)  # (Cout, T)
    y = y + b_ref[...]                              # per-channel bias, lane broadcast
    o_ref[0] = y.astype(o_ref.dtype)                # lane-dense, unmasked store


def _pick_tile(hw: int, n: int, cin: int, cout: int, itemsize: int) -> int:
    """Largest lane-dense (multiple-of-128) spatial tile such that
    (a) the double-buffered input+output tiles stay under the VMEM budget and
    (b) the total grid keeps at least _MIN_GRID_STEPS steps."""
    cin_p = _round_up(max(cin, 1), _SUBLANE)
    cout_p = _round_up(max(cout, 1), _SUBLANE)
    per_lane_bytes = 2 * itemsize * (cin_p + cout_p)          # 2x: double buffering
    t_max = max(_LANE, (_VMEM_WORKING_SET_BYTES // per_lane_bytes) // _LANE * _LANE)

    hw_pad = _round_up(hw, _LANE)
    t = max(_LANE, min(t_max, hw_pad) // _LANE * _LANE)
    # Back off until enough grid steps exist (or we hit the minimum tile).
    while t > _LANE and n * (_round_up(hw_pad, t) // t) < _MIN_GRID_STEPS:
        t = max(_LANE, (t // 2) // _LANE * _LANE)
    return t


@jax.jit
def out_conv(x_nchw, w_oihw, bias):
    """1x1 Conv2d forward.  x: (N, Cin, H, W); w: (Cout, Cin, 1, 1); b: (Cout,)."""
    N, Cin, H, W = x_nchw.shape
    Cout = w_oihw.shape[0]
    HW = H * W

    T = _pick_tile(HW, N, Cin, Cout, x_nchw.dtype.itemsize)
    HW_pad = _round_up(HW, T)

    x = x_nchw.reshape(N, Cin, HW)
    if HW_pad != HW:
        # Zero-pad the spatial axis so stores stay lane-dense; padded columns
        # compute to bias-only values and are sliced off below.
        x = jnp.pad(x, ((0, 0), (0, 0), (0, HW_pad - HW)))
    w = w_oihw.reshape(Cout, Cin)
    b = bias.reshape(Cout, 1).astype(jnp.float32)

    out = pl.pallas_call(
        _outconv_kernel,
        out_shape=jax.ShapeDtypeStruct((N, Cout, HW_pad), x_nchw.dtype),
        grid_spec=pltpu.PrefetchScalarGridSpec(
            num_scalar_prefetch=0,
            grid=(N, HW_pad // T),
            in_specs=[
                pl.BlockSpec((1, Cin, T), lambda n, t: (n, 0, t)),
                pl.BlockSpec((Cout, Cin), lambda n, t: (0, 0)),
                pl.BlockSpec((Cout, 1), lambda n, t: (0, 0)),
            ],
            out_specs=pl.BlockSpec((1, Cout, T), lambda n, t: (n, 0, t)),
        ),
        compiler_params=pltpu.CompilerParams(
            dimension_semantics=("parallel", "parallel"),
            vmem_limit_bytes=_VMEM_LIMIT_BYTES,
        ),
    )(x, w, b)

    if HW_pad != HW:
        out = out[:, :, :HW]
    return out.reshape(N, Cout, H, W)


def _reference(x_nchw, w_oihw, bias):
    """Pure-JAX reference mirroring PyTorch's Conv2d(kernel_size=1)."""
    y = lax.conv_general_dilated(
        x_nchw.astype(jnp.float32), w_oihw.astype(jnp.float32),
        window_strides=(1, 1), padding="VALID",
        dimension_numbers=("NCHW", "OIHW", "NCHW"))
    return y + bias.astype(jnp.float32).reshape(1, -1, 1, 1)


if __name__ == "__main__":
    key = jax.random.PRNGKey(0)
    kx, kw, kb, kx2 = jax.random.split(key, 4)

    # Primary shape (lane-aligned spatial).
    N, Cin, Cout, H, W = 2, 4, 2, 16, 16
    x = jax.random.normal(kx, (N, Cin, H, W), jnp.float32)
    w = jax.random.normal(kw, (Cout, Cin, 1, 1), jnp.float32) * 0.1
    b = jax.random.normal(kb, (Cout,), jnp.float32) * 0.1

    out = jax.block_until_ready(out_conv(x, w, b))
    np.testing.assert_allclose(np.asarray(out), np.asarray(_reference(x, w, b)),
                               rtol=1e-4, atol=1e-5)

    # Odd spatial extent exercises the pad-to-128 path (no masked stores).
    x2 = jax.random.normal(kx2, (N, Cin, 10, 10), jnp.float32)
    out2 = jax.block_until_ready(out_conv(x2, w, b))
    np.testing.assert_allclose(np.asarray(out2), np.asarray(_reference(x2, w, b)),
                               rtol=1e-4, atol=1e-5)

    print("KERNEL_OK")
</pallas_src>

<mosaic_0001>
module attributes {stable_mosaic.version = 11 : i64} {
  func.func @_outconv_kernel(%arg0: i32, %arg1: i32, %arg2: memref<1x4x128xf32, #tpu.memory_space<vmem>>, %arg3: memref<2x4xf32, #tpu.memory_space<vmem>>, %arg4: memref<2x1xf32, #tpu.memory_space<vmem>>, %arg5: memref<1x2x128xf32, #tpu.memory_space<vmem>>) attributes {dimension_semantics = [#tpu.dimension_semantics<parallel>, #tpu.dimension_semantics<parallel>], iteration_bounds = array<i64: 2, 2>, scalar_prefetch = 0 : i64, scratch_operands = 0 : i64, tpu.core_type = #tpu.core_type<tc>, window_params = [{transform_indices = @transform_0, window_bounds = array<i64: 1, 4, 128>}, {pipeline_mode = #tpu.pipeline_mode<synchronous>, transform_indices = @transform_1, window_bounds = array<i64: 2, 4>}, {pipeline_mode = #tpu.pipeline_mode<synchronous>, transform_indices = @transform_2, window_bounds = array<i64: 2, 1>}, {transform_indices = @transform_3, window_bounds = array<i64: 1, 2, 128>}]} {
    %c0 = arith.constant 0 : index
    %c0_0 = arith.constant 0 : index
    %0 = vector.load %arg3[%c0, %c0_0] : memref<2x4xf32, #tpu.memory_space<vmem>>, vector<2x4xf32>
    %c0_1 = arith.constant 0 : index
    %c0_2 = arith.constant 0 : index
    %c0_3 = arith.constant 0 : index
    %1 = vector.load %arg2[%c0_1, %c0_2, %c0_3] : memref<1x4x128xf32, #tpu.memory_space<vmem>>, vector<1x4x128xf32>
    %2 = vector.shape_cast %1 : vector<1x4x128xf32> to vector<4x128xf32>
    %cst = arith.constant dense<0.000000e+00> : vector<2x128xf32>
    %3 = tpu.matmul %0, %2, %cst {dimension_numbers = #tpu.dot_dimension_numbers<[1], [0], [0], [1], [0, 0, 1, 1], [], []>} : vector<2x4xf32>, vector<4x128xf32>, vector<2x128xf32> -> vector<2x128xf32>
    %c0_4 = arith.constant 0 : index
    %c0_5 = arith.constant 0 : index
    %4 = vector.load %arg4[%c0_4, %c0_5] : memref<2x1xf32, #tpu.memory_space<vmem>>, vector<2x1xf32>
    %5 = vector.broadcast %4 : vector<2x1xf32> to vector<2x128xf32>
    %6 = arith.addf %3, %5 : vector<2x128xf32>
    %c0_6 = arith.constant 0 : index
    %c0_7 = arith.constant 0 : index
    %c0_8 = arith.constant 0 : index
    %7 = vector.load %arg5[%c0_6, %c0_7, %c0_8] : memref<1x2x128xf32, #tpu.memory_space<vmem>>, vector<1x2x128xf32>
    %8 = vector.shape_cast %7 : vector<1x2x128xf32> to vector<2x128xf32>
    %9 = vector.shape_cast %6 : vector<2x128xf32> to vector<1x2x128xf32>
    tpu.vector_store %arg5[%c0_6, %c0_7, %c0_8], %9 {strides = array<i32>} : memref<1x2x128xf32, #tpu.memory_space<vmem>>, vector<1x2x128xf32>,
    return
  }
  func.func @transform_0(%arg0: i32, %arg1: i32) -> (i32, i32, i32) {
    %c0_i32 = arith.constant 0 : i32
    %c0_i32_0 = arith.constant 0 : i32
    return %arg0, %c0_i32, %arg1 : i32, i32, i32
  }
  func.func @transform_1(%arg0: i32, %arg1: i32) -> (i32, i32) {
    %c0_i32 = arith.constant 0 : i32
    %c0_i32_0 = arith.constant 0 : i32
    %c0_i32_1 = arith.constant 0 : i32
    return %c0_i32, %c0_i32_0 : i32, i32
  }
  func.func @transform_2(%arg0: i32, %arg1: i32) -> (i32, i32) {
    %c0_i32 = arith.constant 0 : i32
    %c0_i32_0 = arith.constant 0 : i32
    %c0_i32_1 = arith.constant 0 : i32
    return %c0_i32, %c0_i32_0 : i32, i32
  }
  func.func @transform_3(%arg0: i32, %arg1: i32) -> (i32, i32, i32) {
    %c0_i32 = arith.constant 0 : i32
    %c0_i32_0 = arith.constant 0 : i32
    return %arg0, %c0_i32, %arg1 : i32, i32, i32
  }
}

</mosaic_0001>

<llo_original>
// kernel: out_conv.1
$region0: #{out_conv.1}
  #allocation0 [shape = 'u32[]', space=smem, size = 0x4, offset = 0x4, fixed_abs, tag = 'smem constant byte address 0x4 - core index']
  #allocation1 [shape = 'u32[72,128]{1,0:T(1,128)}', space=vmem, size = 0x9000, scoped, tag = 'internal scratch']
  %s0 = inlined_call_operand.vmem [shape: f32[2,4,256], index: 0, kind: input, shape index: {}]
  %s1 = inlined_call_operand.vmem [shape: f32[2,4], index: 1, kind: input, shape index: {}]
  %s2 = inlined_call_operand.vmem [shape: f32[2,1], index: 2, kind: input, shape index: {}]
  %s3 = inlined_call_operand.vmem [shape: f32[2,2,256], index: 3, kind: output, shape index: {}]
  %s4 = sld [smem:[#allocation0]]
  $region45: #{out_conv.1} parent=0
    _
  %s6 = ssub.s32 1, %s4
  %s7 = scalar_select 0, %s6, %s4
  loop: start=0, step=1, limit=6
  $region2: #{out_conv.1} parent=0 // loop_pre_header
    _
  $region3: #{out_conv.1} parent=0 // loop_header
    %s9 = sphi 0, %s13
    %p10 = scmp.ge.s32.totalorder %s9, 6
    %s16 = sphi 0, %s28
    %s17 = sphi 0, %s24
    %s18 = sphi 0, %s16
    %s19 = sphi 0, %s17
    %s20 = sphi 0, %s18
    %s21 = sphi 0, %s19
    %s33 = sphi 0, %s35
    %s36 = sphi 0, %s33
    %s37 = sphi 0, %s36
    %s53 = sphi 0, %s37
    %s57 = sphi 0, %s57
    %s59 = sphi 0, %s57
    %s60 = sphi 0, %s59
    %s74 = sphi 0, %s60
    %s78 = sphi 0, %s78
    %s80 = sphi 0, %s78
    %s81 = sphi 0, %s80
    %s95 = sphi 0, %s81
    %s103 = sphi 0, %s105
    %s106 = sphi 0, %s103
    %s107 = sphi 0, %s106
    %s123 = sphi 0, %s107
  $region4: #{out_conv.1} parent=0 // loop_header_branch
    %12 = sbr.rel (%p10) target = $region8
  $region5: #{out_conv.1} parent=0 // loop_body
    %s14 = ssub.s32 %s9, 1
    %s15 = ssub.s32 %s9, 2
    %s22 = sadd.s32 1, %s17
    %p23 = scmp.ge.s32.totalorder %s22, 2
    %s24 = scalar_select %p23, 0, %s22
    %s25 = sadd.s32 1, %s16
    %s26 = scalar_select %p23, %s25, %s16
    %p27 = scmp.ge.s32.totalorder %s26, 2
    %s28 = scalar_select %p27, 0, %s26
    %s29 = ssub.s32 %s16, %s28
    %s30 = ssub.s32 %s17, %s24
    %s31 = sor.u32 %s29, %s30
    %p32 = scmp.eq.s32.totalorder %s31, 0
    %s34 = sadd.s32 %s33, 1
    %s35 = scalar_select %p32, %s33, %s34
    %p38 = pneg %p32
    %p39 = scmp.eq.s32.totalorder %s9, 3
    %p40 = por %p38, %p39
    %p41 = scmp.ne.s32.totalorder %s33, %s36
    %p42 = scmp.eq.s32.totalorder %s9, 0
    %p43 = por %p41, %p42
    %p44 = scmp.ne.s32.totalorder %s33, %s36
    %p45 = scmp.eq.s32.totalorder %s14, 3
    %p46 = por %p44, %p45
    %p47 = scmp.ne.s32.totalorder %s36, %s37
    %p48 = scmp.eq.s32.totalorder %s14, 0
    %p49 = por %p47, %p48
    %p50 = scmp.ne.s32.totalorder %s36, %s37
    %p51 = scmp.eq.s32.totalorder %s15, 3
    %p52 = por %p50, %p51
    %p54 = scmp.ne.s32.totalorder %s37, %s53
    %p55 = scmp.eq.s32.totalorder %s15, 0
    %p56 = por %p54, %p55
    %s58 = sadd.s32 %s57, 1
    %p61 = scmp.eq.s32.totalorder %s9, 3
    %p62 = scmp.ne.s32.totalorder %s57, %s59
    %p63 = scmp.eq.s32.totalorder %s9, 0
    %p64 = por %p62, %p63
    %p65 = scmp.ne.s32.totalorder %s57, %s59
    %p66 = scmp.eq.s32.totalorder %s14, 3
    %p67 = por %p65, %p66
    %p68 = scmp.ne.s32.totalorder %s59, %s60
    %p69 = scmp.eq.s32.totalorder %s14, 0
    %p70 = por %p68, %p69
    %p71 = scmp.ne.s32.totalorder %s59, %s60
    %p72 = scmp.eq.s32.totalorder %s15, 3
    %p73 = por %p71, %p72
    %p75 = scmp.ne.s32.totalorder %s60, %s74
    %p76 = scmp.eq.s32.totalorder %s15, 0
    %p77 = por %p75, %p76
    %s79 = sadd.s32 %s78, 1
    %p82 = scmp.eq.s32.totalorder %s9, 3
    %p83 = scmp.ne.s32.totalorder %s78, %s80
    %p84 = scmp.eq.s32.totalorder %s9, 0
    %p85 = por %p83, %p84
    %p86 = scmp.ne.s32.totalorder %s78, %s80
    %p87 = scmp.eq.s32.totalorder %s14, 3
    %p88 = por %p86, %p87
    %p89 = scmp.ne.s32.totalorder %s80, %s81
    %p90 = scmp.eq.s32.totalorder %s14, 0
    %p91 = por %p89, %p90
    %p92 = scmp.ne.s32.totalorder %s80, %s81
    %p93 = scmp.eq.s32.totalorder %s15, 3
    %p94 = por %p92, %p93
    %p96 = scmp.ne.s32.totalorder %s81, %s95
    %p97 = scmp.eq.s32.totalorder %s15, 0
    %p98 = por %p96, %p97
    %s99 = ssub.s32 %s16, %s28
    %s100 = ssub.s32 %s17, %s24
    %s101 = sor.u32 %s99, %s100
    %p102 = scmp.eq.s32.totalorder %s101, 0
    %s104 = sadd.s32 %s103, 1
    %s105 = scalar_select %p102, %s103, %s104
    %p108 = pneg %p102
    %p109 = scmp.eq.s32.totalorder %s9, 3
    %p110 = por %p108, %p109
    %p111 = scmp.ne.s32.totalorder %s103, %s106
    %p112 = scmp.eq.s32.totalorder %s9, 0
    %p113 = por %p111, %p112
    %p114 = scmp.ne.s32.totalorder %s103, %s106
    %p115 = scmp.eq.s32.totalorder %s14, 3
    %p116 = por %p114, %p115
    %p117 = scmp.ne.s32.totalorder %s106, %s107
    %p118 = scmp.eq.s32.totalorder %s14, 0
    %p119 = por %p117, %p118
    %p120 = scmp.ne.s32.totalorder %s106, %s107
    %p121 = scmp.eq.s32.totalorder %s15, 3
    %p122 = por %p120, %p121
    %p124 = scmp.ne.s32.totalorder %s107, %s123
    %p125 = scmp.eq.s32.totalorder %s15, 0
    %p126 = por %p124, %p125
    %p127 = scmp.le.s32.totalorder 1, %s9
    %p128 = scmp.lt.s32.totalorder %s9, 5
    %p129 = pnand %p127, %p128
    %p130 = pneg %p129
    // Predicated region
    $region9: #{out_conv.1} parent=5 // pred_check
      _
    $region10: #{out_conv.1} parent=5 // pred_check_branch
      %132 = sbr.rel (%p129) target = $region12
    $region11: #{out_conv.1} parent=5 // pred_region
      %s133 = ssub.s32 %s9, 1
      // Predicated region
      $region13: #{out_conv.1} parent=11 // pred_check
        %p134 = pneg %p70
      $region14: #{out_conv.1} parent=11 // pred_check_branch
        %136 = sbr.rel (%p134) target = $region16
      $region15: #{out_conv.1} parent=11 // pred_region
        _
      $region16: #{out_conv.1} parent=11 // pred_fallthru
        _
      // Predicated region
      $region17: #{out_conv.1} parent=11 // pred_check
        %p137 = pneg %p91
      $region18: #{out_conv.1} parent=11 // pred_check_branch
        %139 = sbr.rel (%p137) target = $region20
      $region19: #{out_conv.1} parent=11 // pred_region
        _
      $region20: #{out_conv.1} parent=11 // pred_fallthru
        _
    $region12: #{out_conv.1} parent=5 // pred_fallthru
      _
    %p140 = scmp.lt.s32.totalorder %s9, 4
    // Predicated region
    $region21: #{out_conv.1} parent=5 // pred_check
      %p141 = pneg %p140
    $region22: #{out_conv.1} parent=5 // pred_check_branch
      %143 = sbr.rel (%p141) target = $region24
    $region23: #{out_conv.1} parent=5 // pred_region
      // Predicated region
      $region25: #{out_conv.1} parent=23 // pred_check
        %p144 = pneg %p43
      $region26: #{out_conv.1} parent=23 // pred_check_branch
        %146 = sbr.rel (%p144) target = $region28
      $region27: #{out_conv.1} parent=23 // pred_region
        %p147 = scmp.lt.s32.totalorder %s16, 1
        %s148 = scalar_select %p147, %s16, 1
        %p149 = scmp.lt.s32.totalorder %s17, 1
        %s150 = scalar_select %p149, %s17, 1
        %s151 = smul.addr %s148, 2
        %s152 = sadd.s32 %s150, %s151
        %s153 = smul.addr %s152, 4
        %s154 = scalar_lea.vmem %s0, %s153
      $region28: #{out_conv.1} parent=23 // pred_fallthru
        _
    $region24: #{out_conv.1} parent=5 // pred_fallthru
      _
    %p155 = scmp.le.s32.totalorder 1, %s9
    %p156 = scmp.lt.s32.totalorder %s9, 5
    %p157 = pnand %p155, %p156
    %p158 = pneg %p157
    // Predicated region
    $region29: #{out_conv.1} parent=5 // pred_check
      _
    $region30: #{out_conv.1} parent=5 // pred_check_branch
      %160 = sbr.rel (%p157) target = $region32
    $region31: #{out_conv.1} parent=5 // pred_region
      %s161 = ssub.s32 %s9, 1
      %p162 = scmp.lt.s32.totalorder %s18, 1
      %s163 = scalar_select %p162, %s18, 1
      %p164 = scmp.lt.s32.totalorder %s19, 1
      %s165 = scalar_select %p164, %s19, 1
      %s166 = smul.addr %s163, 2
      %s167 = sadd.s32 %s165, %s166
      %s168 = smul.addr %s167, 4
      %s169 = scalar_lea.vmem %s0, %s168
      %p170 = pneg %p49
      %p171 = pneg %p46
      %p172 = pneg %p70
      %p173 = pneg %p67
      %p174 = pneg %p91
      %p175 = pneg %p88
      %p176 = pneg %p119
      %p177 = pneg %p116
      %p178 = scmp.lt.s32.totalorder %s18, 1
      %s179 = scalar_select %p178, %s18, 1
      %p180 = scmp.lt.s32.totalorder %s19, 1
      %s181 = scalar_select %p180, %s19, 1
      %s182 = smul.addr %s179, 2
      %s183 = sadd.s32 %s181, %s182
      %s184 = smul.addr %s183, 2
      %s185 = scalar_lea.vmem %s3, %s184
      %p186 = scmp.lt.s32.totalorder %s18, 1
      %s187 = scalar_select %p186, %s18, 1
      %p188 = scmp.lt.s32.totalorder %s19, 1
      %s189 = scalar_select %p188, %s19, 1
      %s190 = smul.addr %s187, 2
      %s191 = sadd.s32 %s189, %s190
      %s192 = smul.addr %s191, 4
      %s193 = scalar_lea.vmem %s0, %s192
      %p194 = scmp.lt.s32.totalorder %s18, 1
      %s195 = scalar_select %p194, %s18, 1
      %p196 = scmp.lt.s32.totalorder %s19, 1
      %s197 = scalar_select %p196, %s19, 1
      %s198 = smul.addr %s195, 2
      %s199 = sadd.s32 %s197, %s198
      %s200 = smul.addr %s199, 2
      %s201 = scalar_lea.vmem %s3, %s200
      %v202 = vld [vmem:[%s1] sm:$0x3]
      %v203 = vld [vmem:[%s193] sm:$0xf]
      %v204 = vld [vmem:[%s2] sm:$0x3]
      %206 = vset.pattern.permute.xlu0 0
      %207 = vperm.xlu0 %206, %v204
      %v208 = vpop.permute.xlu0 %207
      %vm210 = vcmask 31744
      %v212 = vsel %vm210, %v202, 0
      %vm214 = vcmask 1043456
      %v216 = vsel %vm214, %v203, 0
      %218 = vmatpush.msra.mxu0 0.0
      %219 = vmatpush.msra.mxu0 0.0
      %220 = vmatpush.msra.mxu0 0.0
      %221 = vmatpush.msra.mxu0 0.0
      %222 = vmatpush.msra.mxu0 0.0
      %223 = vmatpush.msra.mxu0 0.0
      %224 = vmatpush.msra.mxu0 0.0
      %225 = vmatpush.msra.mxu0 0.0
      %226 = vmatpush.msra.mxu0 0.0
      %227 = vmatpush.msra.mxu0 0.0
      %228 = vmatpush.msra.mxu0 0.0
      %229 = vmatpush.msra.mxu0 0.0
      %230 = vmatpush.msra.mxu0 0.0
      %231 = vmatpush.msra.mxu0 0.0
      %232 = vmatpush.msra.mxu0 0.0
      %233 = vmatpush.msra.mxu0 %v216
      %234 = vmatmul.f32.gmra.mxu0 %v212
      %v235 = vpop.f32.mrf.mxu0
      %v236 = vadd.f32 %v208, %v235
      %237 = vdwg.mxu0
      %238 = vst [vmem:[%s201] sm:$0x3] %v236
      %p239 = scmp.lt.s32.totalorder %s18, 1
      %s240 = scalar_select %p239, %s18, 1
      %p241 = scmp.lt.s32.totalorder %s19, 1
      %s242 = scalar_select %p241, %s19, 1
      %s243 = smul.addr %s240, 2
      %s244 = sadd.s32 %s242, %s243
      %s245 = smul.addr %s244, 2
      %s246 = scalar_lea.vmem %s3, %s245
      // Predicated region
      $region33: #{out_conv.1} parent=31 // pred_check
        %p247 = pneg %p116
      $region34: #{out_conv.1} parent=31 // pred_check_branch
        %249 = sbr.rel (%p247) target = $region36
      $region35: #{out_conv.1} parent=31 // pred_region
        _
      $region36: #{out_conv.1} parent=31 // pred_fallthru
        _
    $region32: #{out_conv.1} parent=5 // pred_fallthru
      _
    %p250 = scmp.le.s32.totalorder 2, %s9
    // Predicated region
    $region37: #{out_conv.1} parent=5 // pred_check
      %p251 = pneg %p250
    $region38: #{out_conv.1} parent=5 // pred_check_branch
      %253 = sbr.rel (%p251) target = $region40
    $region39: #{out_conv.1} parent=5 // pred_region
      %s254 = ssub.s32 %s9, 2
      // Predicated region
      $region41: #{out_conv.1} parent=39 // pred_check
        %p255 = pneg %p122
      $region42: #{out_conv.1} parent=39 // pred_check_branch
        %257 = sbr.rel (%p255) target = $region44
      $region43: #{out_conv.1} parent=39 // pred_region
        %p258 = scmp.lt.s32.totalorder %s20, 1
        %s259 = scalar_select %p258, %s20, 1
        %p260 = scmp.lt.s32.totalorder %s21, 1
        %s261 = scalar_select %p260, %s21, 1
        %s262 = smul.addr %s259, 2
        %s263 = sadd.s32 %s261, %s262
        %s264 = smul.addr %s263, 2
        %s265 = scalar_lea.vmem %s3, %s264
      $region44: #{out_conv.1} parent=39 // pred_fallthru
        _
    $region40: #{out_conv.1} parent=5 // pred_fallthru
      _
  $region6: #{out_conv.1} parent=0 // loop_footer
    %s13 = sadd.s32 1, %s9
  $region7: #{out_conv.1} parent=0 // loop_footer_branch
    %8 = sbr.rel target = $region3
  $region8: #{out_conv.1} parent=0 // loop_exit
    _

</llo_original>
